<compile_context>
chip_gen: v6e
topology: v6e:2x2x1
jax: 0.10.0
libtpu: 0.0.40
codegen_flags: <defaults>
</compile_context>

<pallas_src>
import jax
import jax.numpy as jnp
from jax.experimental import pallas as pl
from jax.experimental.pallas import tpu as pltpu

GAMMA = 2  # BCEFocalLoss default; the kernel hardcodes the gamma=2 square.


def bce_focal_kernel(packed_ref, out_ref):
    data = packed_ref[...]                    # (2, N) f32, one vreg-ish tile
    x = data[0:1, :]                          # logits,  (1, N)
    t = data[1:2, :]                          # targets, (1, N)

    # One exp per element, reused for both the stable BCE term and sigmoid.
    z = jnp.exp(-jnp.abs(x))                  # exp(-|x|) in (0, 1]
    log1p_z = jnp.log1p(z)                    # = softplus(-|x|)

    # Numerically stable BCE-with-logits: max(x, 0) - x*t + log1p(exp(-|x|))
    bce = jnp.maximum(x, 0.0) - x * t + log1p_z

    # sigmoid(x) without a second exp:
    #   x >= 0 : 1 / (1 + exp(-x)) = 1 / (1 + z)
    #   x <  0 : exp(x) / (1 + exp(x)) = z / (1 + z)
    # approx=False keeps full f32 accuracy (approx=True would be a few-ulp
    # approximate vrcp; fine for training but fails a 1e-5 scalar check).
    inv = pl.reciprocal(1.0 + z, approx=False)
    p = jnp.where(x >= 0.0, inv, z * inv)

    # Focal modulation: (1-p)^2 if t >= 0.5 else p^2   (gamma = 2 -> square)
    mod = jnp.where(t >= 0.5, 1.0 - p, p)
    loss = (mod * mod) * bce

    # Mean over all B*C elements (1/N folded as a static constant).
    out_ref[0] = jnp.sum(loss) * (1.0 / loss.size)


def bce_focal_loss(logit, target, gamma=GAMMA):
    """Forward pass of BCEFocalLoss(gamma=2) as a Pallas TPU kernel."""
    assert gamma == 2, "kernel hardcodes the gamma=2 focal square"
    n = logit.size
    # Pack both operands into a single lane-dense (2, N) array -> one DMA.
    packed = jnp.concatenate(
        [logit.astype(jnp.float32).reshape(1, n),
         target.astype(jnp.float32).reshape(1, n)],
        axis=0,
    )
    out = pl.pallas_call(
        bce_focal_kernel,
        out_shape=jax.ShapeDtypeStruct((1,), jnp.float32),
        in_specs=[pl.BlockSpec(memory_space=pltpu.MemorySpace.VMEM)],
        out_specs=pl.BlockSpec(memory_space=pltpu.MemorySpace.SMEM),
        cost_estimate=pl.CostEstimate(
            flops=15 * n,               # ~15 VPU ops per element
            transcendentals=2 * n,      # exp + log1p per element
            bytes_accessed=2 * 4 * n + 4,
        ),
    )(packed)
    return out[0]


def _reference(logit, target):
    """Pure-JAX mirror of the PyTorch math (for correctness checking)."""
    t = target.astype(jnp.float32)
    bce = jnp.maximum(logit, 0.0) - logit * t + jnp.log1p(jnp.exp(-jnp.abs(logit)))
    p = jax.nn.sigmoid(logit)
    loss = jnp.where(t >= 0.5, (1.0 - p) ** GAMMA * bce, p ** GAMMA * bce)
    return jnp.mean(loss)


if __name__ == "__main__":
    B, C = 2, 24  # C=24 matches the module's default (unused) class weights

    key = jax.random.PRNGKey(0)
    k1, k2 = jax.random.split(key, 2)
    logit = jax.random.normal(k1, (B, C), dtype=jnp.float32)
    target = (jax.random.uniform(k2, (B, C)) > 0.5).astype(jnp.float32)

    out = bce_focal_loss(logit, target)
    out = jax.block_until_ready(out)

    ref = _reference(logit, target)
    assert jnp.allclose(out, ref, rtol=1e-5, atol=1e-5), (out, ref)

    print("KERNEL_OK")
</pallas_src>

<mosaic_0001>
module attributes {stable_mosaic.version = 11 : i64} {
  func.func @bce_focal_kernel(%arg0: memref<2x48xf32, #tpu.memory_space<vmem>>, %arg1: memref<1xf32, #tpu.memory_space<smem>>) attributes {dimension_semantics = [], scalar_prefetch = 0 : i64, scratch_operands = 0 : i64, tpu.core_type = #tpu.core_type<tc>} {
    %c0 = arith.constant 0 : index
    %c0_0 = arith.constant 0 : index
    %0 = vector.load %arg0[%c0, %c0_0] : memref<2x48xf32, #tpu.memory_space<vmem>>, vector<2x48xf32>
    %1 = vector.extract_strided_slice %0 {offsets = [0, 0], sizes = [1, 48], strides = [1, 1]} : vector<2x48xf32> to vector<1x48xf32>
    %2 = vector.extract_strided_slice %0 {offsets = [1, 0], sizes = [1, 48], strides = [1, 1]} : vector<2x48xf32> to vector<1x48xf32>
    %3 = math.absf %1 : vector<1x48xf32>
    %cst = arith.constant 0.000000e+00 : f32
    %4 = vector.broadcast %cst : f32 to vector<1x48xf32>
    %5 = arith.subf %4, %3 : vector<1x48xf32>
    %6 = math.exp %5 : vector<1x48xf32>
    %7 = math.log1p %6 : vector<1x48xf32>
    %cst_1 = arith.constant 0.000000e+00 : f32
    %8 = vector.broadcast %cst_1 : f32 to vector<1x48xf32>
    %9 = arith.maximumf %1, %8 : vector<1x48xf32>
    %10 = arith.mulf %1, %2 : vector<1x48xf32>
    %11 = arith.subf %9, %10 : vector<1x48xf32>
    %12 = arith.addf %11, %7 : vector<1x48xf32>
    %cst_2 = arith.constant 1.000000e+00 : f32
    %13 = vector.broadcast %cst_2 : f32 to vector<1x48xf32>
    %14 = arith.addf %13, %6 : vector<1x48xf32>
    %15 = tpu.reciprocal %14 : vector<1x48xf32> -> vector<1x48xf32>
    %cst_3 = arith.constant 0.000000e+00 : f32
    %16 = vector.broadcast %cst_3 : f32 to vector<1x48xf32>
    %17 = arith.cmpf oge, %1, %16 : vector<1x48xf32>
    %18 = arith.mulf %6, %15 : vector<1x48xf32>
    %19 = arith.select %17, %15, %18 : vector<1x48xi1>, vector<1x48xf32>
    %cst_4 = arith.constant 5.000000e-01 : f32
    %20 = vector.broadcast %cst_4 : f32 to vector<1x48xf32>
    %21 = arith.cmpf oge, %2, %20 : vector<1x48xf32>
    %cst_5 = arith.constant 1.000000e+00 : f32
    %22 = vector.broadcast %cst_5 : f32 to vector<1x48xf32>
    %23 = arith.subf %22, %19 : vector<1x48xf32>
    %24 = arith.select %21, %23, %19 : vector<1x48xi1>, vector<1x48xf32>
    %25 = arith.mulf %24, %24 : vector<1x48xf32>
    %26 = arith.mulf %25, %12 : vector<1x48xf32>
    %27 = vector.shape_cast %26 : vector<1x48xf32> to vector<1x1x48xf32>
    %cst_6 = arith.constant dense<0.000000e+00> : vector<1xf32>
    %28 = vector.multi_reduction <add>, %27, %cst_6 [1, 2] : vector<1x1x48xf32> to vector<1xf32>
    %29 = vector.shape_cast %28 : vector<1xf32> to vector<1x1x1xf32>
    %30 = vector.extract %29[0, 0, 0] : f32 from vector<1x1x1xf32>
    %cst_7 = arith.constant 0.020833334 : f32
    %31 = arith.mulf %30, %cst_7 : f32
    %c0_8 = arith.constant 0 : index
    %32 = memref.load %arg1[%c0_8] : memref<1xf32, #tpu.memory_space<smem>>
    memref.store %31, %arg1[%c0_8] : memref<1xf32, #tpu.memory_space<smem>>
    return
  }
}

</mosaic_0001>

<llo_original>
// kernel: tpu_custom_call.1
$region0: #{tpu_custom_call.1}
  #allocation0 [shape = 'u32[]', space=smem, size = 0x4, offset = 0x4, fixed_abs, tag = 'smem constant byte address 0x4 - core index']
  #allocation1 [shape = 'u32[144,128]{1,0:T(1,128)}', space=vmem, size = 0x12000, scoped, tag = 'internal scratch']
  %s0 = inlined_call_operand.hbm [shape: f32[2,48], index: 0, kind: input, shape index: {}]
  %s1 = inlined_call_operand.hbm [shape: f32[1], index: 1, kind: output, shape index: {}]
  %s2 = sld [smem:[#allocation0]]
  $region18: #{tpu_custom_call.1} parent=0
    _
  %s4 = ssub.s32 1, %s2
  %s5 = scalar_select 0, %s4, %s2
  $region1: #{tpu_custom_call.1} parent=0
    #allocation2 [shape = 'u8[1024]{0}', space=vmem, size = 0x400, scoped, tag = 'input window, operand 0, single buffered']
    #allocation3 [shape = 's32[1]{0}', space=sflag, size = 0x4, scoped, tag = 'scoped memory for tpu_custom_call.1']
    #allocation4 [shape = 's32[1]{0}', space=sflag, size = 0x4, scoped, tag = 'scoped memory for tpu_custom_call.1']
    #allocation5 [shape = 'u8[512]{0}', space=smem, size = 0x200, scoped, tag = 'output window, operand 0, single buffered']
    %6 = vsyncpa [#allocation3], 0
    %7 = vsyncpa [#allocation4], 0
    // Predicated region
    $region2: #{tpu_custom_call.1} parent=1 // pred_check
      _
    $region3: #{tpu_custom_call.1} parent=1 // pred_check_branch
      %9 = sbr.rel (0) target = $region5
    $region4: #{tpu_custom_call.1} parent=1 // pred_region
      %s11 = ssub.s32 32, 32
      %12 = vsyncadd [#allocation3], %s11
      %s14 = sshll.u32 [#allocation2], 4
      %s15 = int_to_ptr.vmem [resolvable:$true] %s14
      %17 = dma.hbm_to_vmem [thread:$0]  %s0, 32, %s15, [#allocation3]
    $region5: #{tpu_custom_call.1} parent=1 // pred_fallthru
      _
    // Predicated region
    $region6: #{tpu_custom_call.1} parent=1 // pred_check
      _
    $region7: #{tpu_custom_call.1} parent=1 // pred_check_branch
      %19 = sbr.rel (0) target = $region9
    $region8: #{tpu_custom_call.1} parent=1 // pred_region
      %20 = dma.done [#allocation3], 32
    $region9: #{tpu_custom_call.1} parent=1 // pred_fallthru
      _
    %v21 = vld [vmem:[#allocation2] sm:$0x3]
    %v22 = vand.u32 2147483647, %v21
    %v23 = vsub.f32 0.0, %v22
    %v24 = vmul.f32 %v23, 1.442695
    %v25 = vpow.pop %v24
    %v26 = vadd.f32 %v25, 1.0
    %v27 = vlog2.pop %v26
    %v28 = vmul.f32 %v27, 0.6931472
    %v29 = vmul.f32 -0.5, %v25
    %v30 = vadd.f32 %v29, 1.0
    %v31 = vmul.f32 %v30, %v25
    %v32 = vand.u32 2147483647, %v25
    %vm33 = vcmp.lt.f32.partialorder %v32, 0.0004427343
    %v34 = vsel %vm33, %v31, %v28
    %v35 = vmax.f32 %v21, 0.0
    %v37 = vrot.slane %v21, 1
    %v39 = vmul.f32 %v21, %v37
    %v40 = vsub.f32 %v35, %v39
    %v41 = vadd.f32 %v40, %v34
    %v42 = vadd.f32 %v25, 1.0
    %v43 = vrcp.pop %v42
    %vm44 = vcmp.ge.f32.partialorder %v21, 0.0
    %v45 = vmul.f32 %v25, %v43
    %v46 = vsel %vm44, %v43, %v45
    %vm47 = vcmp.ge.f32.partialorder %v21, 0.5
    %v48 = vsub.f32 1.0, %v46
    %v50 = vrot.slane %v48, 7
    %v53 = vrot.slane %v46, 7
    %v55 = vsel %vm47, %v50, %v53
    %v56 = vmul.f32 %v55, %v55
    %v58 = vrot.slane %v41, 7
    %v60 = vmul.f32 %v56, %v58
    %v62 = vrot.slane %v60, 1
    %vm64 = vcmask 385024
    %v65 = vsel %vm64, %v62, 0.0
    %66 = vadd.xlane.f32.xlu0 %v65
    %v67 = vpop.xlane.xlu0 %66
    %v68 = vrot.slane %v67, 4
    %v69 = vadd.f32 %v67, %v68
    %v70 = vrot.slane %v69, 2
    %v71 = vadd.f32 %v69, %v70
    %v72 = vrot.slane %v71, 1
    %v73 = vadd.f32 %v71, %v72
    %s74 = vtos %v73
    %s75 = smul.f32 %s74, 0.020833334
    %s76 = scalar_lea.smem [#allocation5], 0
    %77 = sst [smem:[%s76]] %s75
    // Predicated region
    $region10: #{tpu_custom_call.1} parent=1 // pred_check
      _
    $region11: #{tpu_custom_call.1} parent=1 // pred_check_branch
      %79 = sbr.rel (0) target = $region13
    $region12: #{tpu_custom_call.1} parent=1 // pred_region
      %s81 = ssub.s32 16, 16
      %82 = vsyncadd [#allocation4], %s81
      %85 = dma.smem_to_hbm [#allocation5], 16, %s1, [#allocation4]
    $region13: #{tpu_custom_call.1} parent=1 // pred_fallthru
      _
    // Predicated region
    $region14: #{tpu_custom_call.1} parent=1 // pred_check
      _
    $region15: #{tpu_custom_call.1} parent=1 // pred_check_branch
      %87 = sbr.rel (0) target = $region17
    $region16: #{tpu_custom_call.1} parent=1 // pred_region
      %88 = dma.done [#allocation4], 16
    $region17: #{tpu_custom_call.1} parent=1 // pred_fallthru
      _
    %89 = sfence
    %90 = vsyncpa [#allocation3], 1
    %91 = vsyncpa [#allocation4], 1

</llo_original>
